<compile_context>
chip_gen: v5e
topology: v5e:2x2
jax: 0.10.0
libtpu: 0.0.40
codegen_flags: <defaults>
</compile_context>

<pallas_src>
import jax
import jax.numpy as jnp
from jax.experimental import pallas as pl
from jax.experimental.pallas import tpu as pltpu


_NEG_LARGE = -1e30  # finite "-inf" for padded expert lanes (exp underflows to 0)


def gating_kernel(x_ref, w_ref, b_ref, o_ref):
    # Cast x to the weight's dtype (bf16 on v5e, otherwise a no-op); MXU
    # accumulation is f32 either way via preferred_element_type.
    x = x_ref[...].astype(w_ref.dtype)
    logits = jnp.dot(x, w_ref[...], preferred_element_type=jnp.float32)
    logits = logits + b_ref[...]                      # (1, E) bias broadcast
    # Numerically-stable softmax over the expert axis.
    m = jnp.max(logits, axis=-1, keepdims=True)
    e = jnp.exp(logits - m)
    denom = jnp.sum(e, axis=-1, keepdims=True)
    # Exact divide (not approx reciprocal): rows sum to 1 exactly enough for
    # downstream top-k / load-balancing losses; kernel is HBM-bound so this
    # costs nothing on the critical path.
    o_ref[...] = (e / denom).astype(o_ref.dtype)


def _round_up(x, m):
    return (x + m - 1) // m * m


def _device_kind():
    try:
        return jax.devices()[0].device_kind.lower()
    except Exception:
        return ""


def _default_vmem_limit_bytes():
    kind = _device_kind()
    if "v7" in kind:
        # v7x: only 64 MiB VMEM per TensorCore -- leave headroom for Mosaic
        # internal scratch / spill instead of requesting all of it.
        return 56 * 1024 * 1024
    if "v5" in kind or "v6" in kind:
        # v5e / v6e: 128 MiB physical VMEM.
        return 100 * 1024 * 1024
    return 48 * 1024 * 1024  # unknown chip: conservative


def _default_matmul_dtype(x_dtype):
    # v5e has no cheap f32 MXU path (multi-pass, ~3x cycles) -> bf16 operands
    # keep the kernel on the HBM roofline there.  v6e/v7x hide the f32 path
    # under the DMA, so keep full input precision (explicit, not silent).
    kind = _device_kind()
    is_v5e = ("v5e" in kind) or ("v5 lite" in kind) or ("v5lite" in kind)
    if is_v5e and jnp.dtype(x_dtype) == jnp.dtype(jnp.float32):
        return jnp.bfloat16
    return x_dtype


def _supports_pipeline_mode():
    # Probe whether this jax version accepts BlockSpec(pipeline_mode=Buffered).
    try:
        pl.BlockSpec((8, 128), lambda i: (0, 0), pipeline_mode=pl.Buffered(1))
        return True
    except Exception:
        return False


def gating_network(x, w, b, *, tile_b=None, vmem_limit_bytes=None, matmul_dtype=None):
    """softmax(x @ w + b, axis=-1) via a Pallas TPU kernel.

    x: (B, D);  w: (D, E) -- transpose of torch nn.Linear's (E, D) weight;  b: (E,)
    """
    B, D = x.shape
    E = w.shape[1]
    out_dtype = x.dtype

    if vmem_limit_bytes is None:
        vmem_limit_bytes = _default_vmem_limit_bytes()
    if matmul_dtype is None:
        matmul_dtype = _default_matmul_dtype(x.dtype)

    # Lane-dense padded expert axis only pays off when D >> 128 (padded output
    # writes negligible vs. the x stream); for small D keep the E real columns.
    lane_dense = D >= 512
    E_out = max(128, _round_up(E, 128)) if lane_dense else E

    x_itemsize = jnp.dtype(x.dtype).itemsize
    w_itemsize = jnp.dtype(matmul_dtype).itemsize
    out_itemsize = jnp.dtype(out_dtype).itemsize

    single_buffer_weight = _supports_pipeline_mode()
    w_bufs = 1 if single_buffer_weight else 2

    # ---- auto tile sizing: biggest x tile that fits the VMEM budget ----------
    if tile_b is None:
        budget = int(vmem_limit_bytes * 0.9)                       # Mosaic headroom
        resident = w_bufs * (w_itemsize * D * E_out + 4 * E_out)   # weight + f32 bias
        bytes_per_row = 2 * (x_itemsize * D + out_itemsize * E_out)  # 2x-buffered rows
        avail = budget - resident
        if avail < 8 * bytes_per_row:
            # TODO(synk): add a D-reduction grid axis (K tiling + accumulator)
            # so the weight need not be fully VMEM-resident for huge D*E.
            raise ValueError(
                f"gating weight ({D}x{E_out} {jnp.dtype(matmul_dtype).name}) leaves no "
                f"room for an 8-row batch tile within vmem_limit_bytes={vmem_limit_bytes}")
        max_rows = (avail // bytes_per_row // 8) * 8
        # Keep >=4 grid steps when B allows it (2 per TC on v7x megacore, and
        # at least 2 everywhere so the pipeline actually overlaps DMA/compute);
        # otherwise just take the biggest tile that fits.
        tile_from_steps = _round_up(-(-B // 4), 8)
        tile_b = int(max(8, min(max_rows, tile_from_steps)))
    else:
        tile_b = max(8, (int(tile_b) // 8) * 8)

    # No batch padding of x: ragged final block is masked by Pallas.
    grid = (pl.cdiv(B, tile_b),)

    # ---- one-off weight/bias prep (layout plumbing; x is passed untouched) ---
    w_p = w.astype(matmul_dtype)
    b_p = b.astype(jnp.float32).reshape(1, E)
    if E_out != E:
        w_p = jnp.pad(w_p, ((0, 0), (0, E_out - E)))
        # Padded experts get a hugely negative bias -> exactly 0 probability.
        b_p = jnp.pad(b_p, ((0, 0), (0, E_out - E)), constant_values=_NEG_LARGE)

    def _const_spec(shape):
        # Grid-invariant operand: single-buffer it when supported (saves one
        # D*E_out weight copy of VMEM, which directly lets tile_b grow).
        if single_buffer_weight:
            return pl.BlockSpec(shape, lambda i: (0, 0), pipeline_mode=pl.Buffered(1))
        return pl.BlockSpec(shape, lambda i: (0, 0))

    out = pl.pallas_call(
        gating_kernel,
        out_shape=jax.ShapeDtypeStruct((B, E_out), out_dtype),
        grid_spec=pltpu.PrefetchScalarGridSpec(
            num_scalar_prefetch=0,
            grid=grid,
            in_specs=[
                pl.BlockSpec((tile_b, D), lambda i: (i, 0)),   # streamed x tiles
                _const_spec((D, E_out)),                        # resident weight
                _const_spec((1, E_out)),                        # resident bias (f32)
            ],
            out_specs=pl.BlockSpec((tile_b, E_out), lambda i: (i, 0)),
        ),
        compiler_params=pltpu.CompilerParams(
            dimension_semantics=("parallel",),   # shard batch steps across TCs (v7x)
            vmem_limit_bytes=vmem_limit_bytes,
        ),
        cost_estimate=pl.CostEstimate(
            flops=2 * B * D * E_out,
            transcendentals=B * E_out,
            bytes_accessed=(x_itemsize * B * D
                            + w_itemsize * D * E_out
                            + out_itemsize * B * E_out),
        ),
    )(x, w_p, b_p)

    return out[:, :E] if E_out != E else out


if __name__ == "__main__":
    # Small shapes consistent with the module: a batch of token vectors.
    B, D, E = 16, 32, 8  # batch, input_dim, num_experts

    key = jax.random.PRNGKey(0)
    kx, kw, kb = jax.random.split(key, 3)

    # Match nn.Linear's uniform(-1/sqrt(D), 1/sqrt(D)) init range.
    bound = 1.0 / (D ** 0.5)
    x = jax.random.normal(kx, (B, D), dtype=jnp.float32)
    w = jax.random.uniform(kw, (D, E), minval=-bound, maxval=bound, dtype=jnp.float32)
    b = jax.random.uniform(kb, (E,), minval=-bound, maxval=bound, dtype=jnp.float32)

    # Auto tiling gives tile_b=8 -> grid=2 even at this tiny size, exercising
    # the pipelined path; production shapes get VMEM-sized tiles.
    out = gating_network(x, w, b)
    out = jax.block_until_ready(out)

    # Cross-check against a plain JAX reference.
    ref = jax.nn.softmax(x @ w + b, axis=-1)
    assert out.shape == (B, E)
    # Tolerance is looser only if the auto path fed bf16 operands to the MXU (v5e).
    bf16_path = jnp.dtype(_default_matmul_dtype(jnp.float32)) == jnp.dtype(jnp.bfloat16)
    tol = 2e-2 if bf16_path else 1e-3
    assert jnp.allclose(out, ref, atol=tol, rtol=tol), float(jnp.max(jnp.abs(out - ref)))
    assert jnp.allclose(jnp.sum(out, axis=-1), 1.0, atol=1e-4)

    print("KERNEL_OK")
</pallas_src>

<mosaic_0001>
module attributes {stable_mosaic.version = 11 : i64} {
  func.func @gating_kernel(%arg0: i32, %arg1: memref<8x32xf32, #tpu.memory_space<vmem>>, %arg2: memref<32x8xf32, #tpu.memory_space<vmem>>, %arg3: memref<1x8xf32, #tpu.memory_space<vmem>>, %arg4: memref<8x8xf32, #tpu.memory_space<vmem>>) attributes {dimension_semantics = [#tpu.dimension_semantics<parallel>], iteration_bounds = array<i64: 2>, scalar_prefetch = 0 : i64, scratch_operands = 0 : i64, tpu.core_type = #tpu.core_type<tc>, window_params = [{transform_indices = @transform_0, window_bounds = array<i64: 8, 32>}, {pipeline_mode = #tpu.pipeline_mode<synchronous>, transform_indices = @transform_1, window_bounds = array<i64: 32, 8>}, {pipeline_mode = #tpu.pipeline_mode<synchronous>, transform_indices = @transform_2, window_bounds = array<i64: 1, 8>}, {transform_indices = @transform_3, window_bounds = array<i64: 8, 8>}]} {
    %c0 = arith.constant 0 : index
    %c0_0 = arith.constant 0 : index
    %0 = vector.load %arg1[%c0, %c0_0] : memref<8x32xf32, #tpu.memory_space<vmem>>, vector<8x32xf32>
    %c0_1 = arith.constant 0 : index
    %c0_2 = arith.constant 0 : index
    %1 = vector.load %arg2[%c0_1, %c0_2] : memref<32x8xf32, #tpu.memory_space<vmem>>, vector<32x8xf32>
    %cst = arith.constant dense<0.000000e+00> : vector<8x8xf32>
    %2 = tpu.matmul %0, %1, %cst {dimension_numbers = #tpu.dot_dimension_numbers<[1], [0], [0], [1], [0, 0, 1, 1], [], []>} : vector<8x32xf32>, vector<32x8xf32>, vector<8x8xf32> -> vector<8x8xf32>
    %c0_3 = arith.constant 0 : index
    %c0_4 = arith.constant 0 : index
    %3 = vector.load %arg3[%c0_3, %c0_4] : memref<1x8xf32, #tpu.memory_space<vmem>>, vector<1x8xf32>
    %4 = vector.broadcast %3 : vector<1x8xf32> to vector<8x8xf32>
    %5 = arith.addf %2, %4 : vector<8x8xf32>
    %cst_5 = arith.constant dense<0xFF800000> : vector<8xf32>
    %6 = vector.multi_reduction <maximumf>, %5, %cst_5 [1] : vector<8x8xf32> to vector<8xf32>
    %7 = vector.shape_cast %6 : vector<8xf32> to vector<8x1xf32>
    %8 = vector.broadcast %7 : vector<8x1xf32> to vector<8x8xf32>
    %9 = arith.subf %5, %8 : vector<8x8xf32>
    %10 = math.exp %9 : vector<8x8xf32>
    %cst_6 = arith.constant dense<0.000000e+00> : vector<8xf32>
    %11 = vector.multi_reduction <add>, %10, %cst_6 [1] : vector<8x8xf32> to vector<8xf32>
    %12 = vector.shape_cast %11 : vector<8xf32> to vector<8x1xf32>
    %13 = vector.broadcast %12 : vector<8x1xf32> to vector<8x8xf32>
    %14 = arith.divf %10, %13 : vector<8x8xf32>
    %c0_7 = arith.constant 0 : index
    %c0_8 = arith.constant 0 : index
    %15 = vector.load %arg4[%c0_7, %c0_8] : memref<8x8xf32, #tpu.memory_space<vmem>>, vector<8x8xf32>
    tpu.vector_store %arg4[%c0_7, %c0_8], %14 {strides = array<i32>} : memref<8x8xf32, #tpu.memory_space<vmem>>, vector<8x8xf32>,
    return
  }
  func.func @transform_0(%arg0: i32) -> (i32, i32) {
    %c0_i32 = arith.constant 0 : i32
    %c0_i32_0 = arith.constant 0 : i32
    return %arg0, %c0_i32 : i32, i32
  }
  func.func @transform_1(%arg0: i32) -> (i32, i32) {
    %c0_i32 = arith.constant 0 : i32
    %c0_i32_0 = arith.constant 0 : i32
    %c0_i32_1 = arith.constant 0 : i32
    return %c0_i32, %c0_i32_0 : i32, i32
  }
  func.func @transform_2(%arg0: i32) -> (i32, i32) {
    %c0_i32 = arith.constant 0 : i32
    %c0_i32_0 = arith.constant 0 : i32
    %c0_i32_1 = arith.constant 0 : i32
    return %c0_i32, %c0_i32_0 : i32, i32
  }
  func.func @transform_3(%arg0: i32) -> (i32, i32) {
    %c0_i32 = arith.constant 0 : i32
    %c0_i32_0 = arith.constant 0 : i32
    return %arg0, %c0_i32 : i32, i32
  }
}

</mosaic_0001>

<llo_original>
// kernel: tpu_custom_call.1
$region0: #{tpu_custom_call.1}
  #allocation0 [shape = 'u32[]', space=smem, size = 0x4, offset = 0x4, fixed_abs, tag = 'smem constant byte address 0x4 - core index']
  #allocation1 [shape = 'u32[72,128]{1,0:T(1,128)}', space=vmem, size = 0x9000, scoped, tag = 'internal scratch']
  %s0 = inlined_call_operand.vmem [shape: f32[16,32], index: 0, kind: input, shape index: {}]
  %s1 = inlined_call_operand.vmem [shape: f32[32,8], index: 1, kind: input, shape index: {}]
  %s2 = inlined_call_operand.vmem [shape: f32[1,8], index: 2, kind: input, shape index: {}]
  %s3 = inlined_call_operand.vmem [shape: f32[16,8], index: 3, kind: output, shape index: {}]
  %s4 = sld [smem:[#allocation0]]
  $region45: #{tpu_custom_call.1} parent=0
    _
  %s6 = ssub.s32 1, %s4
  %s7 = scalar_select 0, %s6, %s4
  loop: start=0, step=1, limit=4
  $region2: #{tpu_custom_call.1} parent=0 // loop_pre_header
    _
  $region3: #{tpu_custom_call.1} parent=0 // loop_header
    %s9 = sphi 0, %s13
    %p10 = scmp.ge.s32.totalorder %s9, 4
    %s19 = sphi 0, %s21
    %s22 = sphi 0, %s19
    %s23 = sphi 0, %s22
    %s39 = sphi 0, %s23
    %s43 = sphi 0, %s43
    %s45 = sphi 0, %s43
    %s46 = sphi 0, %s45
    %s60 = sphi 0, %s46
    %s64 = sphi 0, %s64
    %s66 = sphi 0, %s64
    %s67 = sphi 0, %s66
    %s81 = sphi 0, %s67
    %s87 = sphi 0, %s89
    %s90 = sphi 0, %s87
    %s91 = sphi 0, %s90
    %s107 = sphi 0, %s91
  $region4: #{tpu_custom_call.1} parent=0 // loop_header_branch
    %12 = sbr.rel (%p10) target = $region8
  $region5: #{tpu_custom_call.1} parent=0 // loop_body
    %s14 = ssub.s32 %s9, 1
    %s15 = ssub.s32 %s9, 2
    %s16 = sadd.s32 %s9, 1
    %s17 = ssub.s32 %s9, %s16
    %p18 = scmp.eq.s32.totalorder %s17, 0
    %s20 = sadd.s32 %s19, 1
    %s21 = scalar_select %p18, %s19, %s20
    %p24 = pneg %p18
    %p25 = scmp.eq.s32.totalorder %s9, 1
    %p26 = por %p24, %p25
    %p27 = scmp.ne.s32.totalorder %s19, %s22
    %p28 = scmp.eq.s32.totalorder %s9, 0
    %p29 = por %p27, %p28
    %p30 = scmp.ne.s32.totalorder %s19, %s22
    %p31 = scmp.eq.s32.totalorder %s14, 1
    %p32 = por %p30, %p31
    %p33 = scmp.ne.s32.totalorder %s22, %s23
    %p34 = scmp.eq.s32.totalorder %s14, 0
    %p35 = por %p33, %p34
    %p36 = scmp.ne.s32.totalorder %s22, %s23
    %p37 = scmp.eq.s32.totalorder %s15, 1
    %p38 = por %p36, %p37
    %p40 = scmp.ne.s32.totalorder %s23, %s39
    %p41 = scmp.eq.s32.totalorder %s15, 0
    %p42 = por %p40, %p41
    %s44 = sadd.s32 %s43, 1
    %p47 = scmp.eq.s32.totalorder %s9, 1
    %p48 = scmp.ne.s32.totalorder %s43, %s45
    %p49 = scmp.eq.s32.totalorder %s9, 0
    %p50 = por %p48, %p49
    %p51 = scmp.ne.s32.totalorder %s43, %s45
    %p52 = scmp.eq.s32.totalorder %s14, 1
    %p53 = por %p51, %p52
    %p54 = scmp.ne.s32.totalorder %s45, %s46
    %p55 = scmp.eq.s32.totalorder %s14, 0
    %p56 = por %p54, %p55
    %p57 = scmp.ne.s32.totalorder %s45, %s46
    %p58 = scmp.eq.s32.totalorder %s15, 1
    %p59 = por %p57, %p58
    %p61 = scmp.ne.s32.totalorder %s46, %s60
    %p62 = scmp.eq.s32.totalorder %s15, 0
    %p63 = por %p61, %p62
    %s65 = sadd.s32 %s64, 1
    %p68 = scmp.eq.s32.totalorder %s9, 1
    %p69 = scmp.ne.s32.totalorder %s64, %s66
    %p70 = scmp.eq.s32.totalorder %s9, 0
    %p71 = por %p69, %p70
    %p72 = scmp.ne.s32.totalorder %s64, %s66
    %p73 = scmp.eq.s32.totalorder %s14, 1
    %p74 = por %p72, %p73
    %p75 = scmp.ne.s32.totalorder %s66, %s67
    %p76 = scmp.eq.s32.totalorder %s14, 0
    %p77 = por %p75, %p76
    %p78 = scmp.ne.s32.totalorder %s66, %s67
    %p79 = scmp.eq.s32.totalorder %s15, 1
    %p80 = por %p78, %p79
    %p82 = scmp.ne.s32.totalorder %s67, %s81
    %p83 = scmp.eq.s32.totalorder %s15, 0
    %p84 = por %p82, %p83
    %s85 = ssub.s32 %s9, %s16
    %p86 = scmp.eq.s32.totalorder %s85, 0
    %s88 = sadd.s32 %s87, 1
    %s89 = scalar_select %p86, %s87, %s88
    %p92 = pneg %p86
    %p93 = scmp.eq.s32.totalorder %s9, 1
    %p94 = por %p92, %p93
    %p95 = scmp.ne.s32.totalorder %s87, %s90
    %p96 = scmp.eq.s32.totalorder %s9, 0
    %p97 = por %p95, %p96
    %p98 = scmp.ne.s32.totalorder %s87, %s90
    %p99 = scmp.eq.s32.totalorder %s14, 1
    %p100 = por %p98, %p99
    %p101 = scmp.ne.s32.totalorder %s90, %s91
    %p102 = scmp.eq.s32.totalorder %s14, 0
    %p103 = por %p101, %p102
    %p104 = scmp.ne.s32.totalorder %s90, %s91
    %p105 = scmp.eq.s32.totalorder %s15, 1
    %p106 = por %p104, %p105
    %p108 = scmp.ne.s32.totalorder %s91, %s107
    %p109 = scmp.eq.s32.totalorder %s15, 0
    %p110 = por %p108, %p109
    %p111 = scmp.le.s32.totalorder 1, %s9
    %p112 = scmp.lt.s32.totalorder %s9, 3
    %p113 = pnand %p111, %p112
    %p114 = pneg %p113
    // Predicated region
    $region9: #{tpu_custom_call.1} parent=5 // pred_check
      _
    $region10: #{tpu_custom_call.1} parent=5 // pred_check_branch
      %116 = sbr.rel (%p113) target = $region12
    $region11: #{tpu_custom_call.1} parent=5 // pred_region
      %s117 = ssub.s32 %s9, 1
      // Predicated region
      $region13: #{tpu_custom_call.1} parent=11 // pred_check
        %p118 = pneg %p56
      $region14: #{tpu_custom_call.1} parent=11 // pred_check_branch
        %120 = sbr.rel (%p118) target = $region16
      $region15: #{tpu_custom_call.1} parent=11 // pred_region
        _
      $region16: #{tpu_custom_call.1} parent=11 // pred_fallthru
        _
      // Predicated region
      $region17: #{tpu_custom_call.1} parent=11 // pred_check
        %p121 = pneg %p77
      $region18: #{tpu_custom_call.1} parent=11 // pred_check_branch
        %123 = sbr.rel (%p121) target = $region20
      $region19: #{tpu_custom_call.1} parent=11 // pred_region
        _
      $region20: #{tpu_custom_call.1} parent=11 // pred_fallthru
        _
    $region12: #{tpu_custom_call.1} parent=5 // pred_fallthru
      _
    %p124 = scmp.lt.s32.totalorder %s9, 2
    // Predicated region
    $region21: #{tpu_custom_call.1} parent=5 // pred_check
      %p125 = pneg %p124
    $region22: #{tpu_custom_call.1} parent=5 // pred_check_branch
      %127 = sbr.rel (%p125) target = $region24
    $region23: #{tpu_custom_call.1} parent=5 // pred_region
      // Predicated region
      $region25: #{tpu_custom_call.1} parent=23 // pred_check
        %p128 = pneg %p29
      $region26: #{tpu_custom_call.1} parent=23 // pred_check_branch
        %130 = sbr.rel (%p128) target = $region28
      $region27: #{tpu_custom_call.1} parent=23 // pred_region
        %p131 = scmp.lt.s32.totalorder %s9, 1
        %s132 = scalar_select %p131, %s9, 1
        %s133 = smul.addr %s132, 8
        %s134 = scalar_lea.vmem %s0, %s133
      $region28: #{tpu_custom_call.1} parent=23 // pred_fallthru
        _
    $region24: #{tpu_custom_call.1} parent=5 // pred_fallthru
      _
    %p135 = scmp.le.s32.totalorder 1, %s9
    %p136 = scmp.lt.s32.totalorder %s9, 3
    %p137 = pnand %p135, %p136
    %p138 = pneg %p137
    // Predicated region
    $region29: #{tpu_custom_call.1} parent=5 // pred_check
      _
    $region30: #{tpu_custom_call.1} parent=5 // pred_check_branch
      %140 = sbr.rel (%p137) target = $region32
    $region31: #{tpu_custom_call.1} parent=5 // pred_region
      %s141 = ssub.s32 %s9, 1
      %p142 = scmp.lt.s32.totalorder %s14, 1
      %s143 = scalar_select %p142, %s14, 1
      %s144 = smul.addr %s143, 8
      %s145 = scalar_lea.vmem %s0, %s144
      %p146 = pneg %p35
      %p147 = pneg %p32
      %p148 = pneg %p56
      %p149 = pneg %p53
      %p150 = pneg %p77
      %p151 = pneg %p74
      %p152 = pneg %p103
      %p153 = pneg %p100
      %p154 = scmp.lt.s32.totalorder %s14, 1
      %s155 = scalar_select %p154, %s14, 1
      %s156 = smul.addr %s155, 8
      %s157 = scalar_lea.vmem %s3, %s156
      %p158 = scmp.lt.s32.totalorder %s14, 1
      %s159 = scalar_select %p158, %s14, 1
      %s160 = smul.addr %s159, 8
      %s161 = scalar_lea.vmem %s0, %s160
      %p162 = scmp.lt.s32.totalorder %s14, 1
      %s163 = scalar_select %p162, %s14, 1
      %s164 = smul.addr %s163, 8
      %s165 = scalar_lea.vmem %s3, %s164
      %v166 = vld [vmem:[%s161] sm:$0xff]
      %v167 = vld [vmem:[%s1] sm:$0xff]
      %v168 = vld [vmem:[%s1 + $0x8] sm:$0xff]
      %v169 = vld [vmem:[%s1 + $0x10] sm:$0xff]
      %v170 = vld [vmem:[%s1 + $0x18] sm:$0xff]
      %v171 = vld [vmem:[%s2] sm:$0x1]
      %v173 = vperm.slane %v171, 0
      %vm175 = vcmask 261120
      %v177 = vsel %vm175, %v166, 0
      %179 = vmatpush.msra.mxu0 0.0
      %180 = vmatpush.msra.mxu0 0.0
      %181 = vmatpush.msra.mxu0 0.0
      %182 = vmatpush.msra.mxu0 0.0
      %183 = vmatpush.msra.mxu0 0.0
      %184 = vmatpush.msra.mxu0 0.0
      %185 = vmatpush.msra.mxu0 0.0
      %186 = vmatpush.msra.mxu0 0.0
      %187 = vmatpush.msra.mxu0 0.0
      %188 = vmatpush.msra.mxu0 0.0
      %189 = vmatpush.msra.mxu0 0.0
      %190 = vmatpush.msra.mxu0 0.0
      %191 = vmatpush.msra.mxu0 %v170
      %192 = vmatpush.msra.mxu0 %v169
      %193 = vmatpush.msra.mxu0 %v168
      %194 = vmatpush.msra.mxu0 %v167
      %195 = vmatmul.f32.gmra.mxu0 %v177
      %v196 = vpop.f32.mrf.mxu0
      %v197 = vadd.f32 %v173, %v196
      %198 = vdwg.mxu0
      %vm199 = vcmask 64512
      %v200 = vsel %vm199, %v197, -inf
      %201 = vmax.xlane.f32.xlu0 %v200
      %v202 = vpop.xlane.xlu0 %201
      %v203 = vsub.f32 %v197, %v202
      %v204 = vmul.f32 %v203, 1.442695
      %v205 = vpow.pop %v204
      %v206 = vsel %vm199, %v205, 0.0
      %207 = vadd.xlane.f32.xlu0 %v206
      %v208 = vpop.xlane.xlu0 %207
      %v209 = vrcp.pop %v208
      %v210 = vmul.f32 %v208, %v209
      %v211 = vsub.f32 1.0, %v210
      %v212 = vmul.f32 %v209, %v211
      %v213 = vadd.f32 %v209, %v212
      %vm214 = vweird.f32 %v208
      %vm215 = vweird.f32 %v209
      %vm216 = vmor %vm214, %vm215
      %v217 = vsel %vm216, %v209, %v213
      %v218 = vand.u32 2147483647, %v208
      %vm219 = vcmp.eq.f32.partialorder %v218, 8.507059e+37
      %v220 = vand.u32 %v208, 2147483648
      %v221 = vor.u32 1.1754944e-38, %v220
      %v222 = vsel %vm219, %v221, %v217
      %v223 = vmul.f32 %v205, %v222
      %224 = vst.msk [vmem:[%s165] sm:$0xff] %vm199, %v223
      %p225 = scmp.lt.s32.totalorder %s14, 1
      %s226 = scalar_select %p225, %s14, 1
      %s227 = smul.addr %s226, 8
      %s228 = scalar_lea.vmem %s3, %s227
      // Predicated region
      $region33: #{tpu_custom_call.1} parent=31 // pred_check
        %p229 = pneg %p100
      $region34: #{tpu_custom_call.1} parent=31 // pred_check_branch
        %231 = sbr.rel (%p229) target = $region36
      $region35: #{tpu_custom_call.1} parent=31 // pred_region
        _
      $region36: #{tpu_custom_call.1} parent=31 // pred_fallthru
        _
    $region32: #{tpu_custom_call.1} parent=5 // pred_fallthru
      _
    %p232 = scmp.le.s32.totalorder 2, %s9
    // Predicated region
    $region37: #{tpu_custom_call.1} parent=5 // pred_check
      %p233 = pneg %p232
    $region38: #{tpu_custom_call.1} parent=5 // pred_check_branch
      %235 = sbr.rel (%p233) target = $region40
    $region39: #{tpu_custom_call.1} parent=5 // pred_region
      %s236 = ssub.s32 %s9, 2
      // Predicated region
      $region41: #{tpu_custom_call.1} parent=39 // pred_check
        %p237 = pneg %p106
      $region42: #{tpu_custom_call.1} parent=39 // pred_check_branch
        %239 = sbr.rel (%p237) target = $region44
      $region43: #{tpu_custom_call.1} parent=39 // pred_region
        %p240 = scmp.lt.s32.totalorder %s15, 1
        %s241 = scalar_select %p240, %s15, 1
        %s242 = smul.addr %s241, 8
        %s243 = scalar_lea.vmem %s3, %s242
      $region44: #{tpu_custom_call.1} parent=39 // pred_fallthru
        _
    $region40: #{tpu_custom_call.1} parent=5 // pred_fallthru
      _
  $region6: #{tpu_custom_call.1} parent=0 // loop_footer
    %s13 = sadd.s32 1, %s9
  $region7: #{tpu_custom_call.1} parent=0 // loop_footer_branch
    %8 = sbr.rel target = $region3
  $region8: #{tpu_custom_call.1} parent=0 // loop_exit
    _

</llo_original>
